<compile_context>
chip_gen: v7x
topology: tpu7x:2x2x1
jax: 0.10.0
libtpu: 0.0.40
codegen_flags: <defaults>
</compile_context>

<pallas_src>
import functools

import jax
import jax.numpy as jnp
import numpy as np
from jax.experimental import pallas as pl
from jax.experimental.pallas import tpu as pltpu

# cost_matrix from the reference module
COST_MATRIX = ((0.0, 3.0), (1.0, 0.0))

_LANES = 128


def _round_up(x, m):
    return ((x + m - 1) // m) * m


def _cs_partials_kernel(logits_ref, labels_ref, partial_ref, *,
                        tile_r, n_true, diag0, diag1):
    """Per-block partial sums for the cost-sensitive cross entropy.

    logits_ref : (2, tile_r, 128) f32   -- class-0 plane, class-1 plane
    labels_ref : (tile_r, 128)   int32
    partial_ref: (1, 3, 128)     f32    -- sublanes = [sum_nll, sum_w*nll, sum_w]
    """
    i = pl.program_id(0)

    z0 = logits_ref[0, :, :]
    z1 = logits_ref[1, :, :]
    labels = labels_ref[...]

    is1 = labels == 1
    # C == 2 specialization of cross entropy:
    #   nll_i = -log_softmax(z_i)[y_i] = softplus(z_other - z_label)
    # computed stably as max(d, 0) + log(1 + exp(-|d|)); one exp + one log
    # per sample, all elementwise (VPU/EUP), no per-sample class reduction.
    d = jnp.where(is1, z0 - z1, z1 - z0)
    nll = jnp.maximum(d, 0.0) + jnp.log(1.0 + jnp.exp(-jnp.abs(d)))

    # Per-sample weight used by F.cross_entropy's weighted-mean: cost[y_i, y_i].
    # diag(cost) is baked in as constants -> simple select, no MXU matmul.
    w = jnp.where(is1, jnp.float32(diag1), jnp.float32(diag0))

    # Mask padded tail samples (wrapper zero-pads to a whole number of tiles).
    row = jax.lax.broadcasted_iota(jnp.int32, labels.shape, 0)
    lane = jax.lax.broadcasted_iota(jnp.int32, labels.shape, 1)
    gidx = (i * tile_r + row) * _LANES + lane
    mask = (gidx < n_true).astype(jnp.float32)

    nll_m = nll * mask
    sum_nll = jnp.sum(nll_m, keepdims=True)        # (1, 1)
    sum_wnll = jnp.sum(w * nll_m, keepdims=True)   # (1, 1)
    sum_w = jnp.sum(w * mask, keepdims=True)       # (1, 1)

    partial_ref[0, :, :] = jnp.concatenate(
        [
            jnp.broadcast_to(sum_nll, (1, _LANES)),
            jnp.broadcast_to(sum_wnll, (1, _LANES)),
            jnp.broadcast_to(sum_w, (1, _LANES)),
        ],
        axis=0,
    )


def cost_sensitive_loss(outputs, labels, cost_matrix=COST_MATRIX, max_tile_rows=64):
    """Pallas implementation of CostSensitiveLoss.forward.

    Returns (cs_loss, ce_loss); the PyTorch module returns cs_loss.

    # TODO(synk): the reference code passes an [N, C] `weight` tensor to
    # F.cross_entropy, which PyTorch itself rejects (weight must be 1-D of
    # size C).  We implement the natural generalization: per-sample weight
    # cost[y_i, y_i] with PyTorch's weighted-mean normalization.  With the
    # zero-diagonal cost matrix this is 0/0 -> NaN by construction, which is
    # reproduced faithfully rather than patched.
    """
    outputs = jnp.asarray(outputs, jnp.float32)
    n, c = outputs.shape
    assert c == 2, "kernel is specialized for the binary (C=2) head of this module"
    assert max_tile_rows % 8 == 0, "tile rows must be a multiple of 8 sublanes"

    cm = np.asarray(cost_matrix, dtype=np.float32)
    assert cm.shape == (2, 2)
    diag0, diag1 = float(cm[0, 0]), float(cm[1, 1])

    labels = jnp.asarray(labels, jnp.int32).reshape(n)

    # Lane-dense layout: (N, 2) -> (2, R, 128); labels -> (R, 128); zero-pad tail.
    r = pl.cdiv(n, _LANES)
    tile_r = r if r <= max_tile_rows else max_tile_rows   # 64 rows = 8192 samples/tile
    r_pad = _round_up(r, tile_r)
    n_pad = r_pad * _LANES
    num_blocks = r_pad // tile_r

    logits_t = jnp.pad(outputs.T, ((0, 0), (0, n_pad - n))).reshape(2, r_pad, _LANES)
    labels_p = jnp.pad(labels, (0, n_pad - n)).reshape(r_pad, _LANES)

    kernel = functools.partial(
        _cs_partials_kernel, tile_r=tile_r, n_true=n, diag0=diag0, diag1=diag1)

    # VMEM per step (double-buffered): ~(2*tile_r*128 + tile_r*128)*4*2 bytes
    # = ~200 KiB at tile_r=64 -- far under v7x's 64 MiB / default scoped limit.
    partials = pl.pallas_call(
        kernel,
        out_shape=jax.ShapeDtypeStruct((num_blocks, 3, _LANES), jnp.float32),
        grid=(num_blocks,),
        in_specs=[
            pl.BlockSpec((2, tile_r, _LANES), lambda i: (0, i, 0)),  # logits planes
            pl.BlockSpec((tile_r, _LANES), lambda i: (i, 0)),        # labels
        ],
        out_specs=pl.BlockSpec((1, 3, _LANES), lambda i: (i, 0, 0)),  # per-block partials
        compiler_params=pltpu.CompilerParams(dimension_semantics=("parallel",)),
    )(logits_t, labels_p)

    # Tiny finalize in the wrapper (lets the grid stay fully parallel / 2-TC on v7x).
    sums = jnp.sum(partials[:, :, 0], axis=0)   # (3,)
    ce_loss = sums[0] / n                       # divide by the TRUE batch size
    cs_loss = sums[1] / sums[2]                 # weighted mean (NaN for zero-diag cost)
    return cs_loss, ce_loss


if __name__ == "__main__":
    key = jax.random.PRNGKey(0)
    k_logits, k_labels = jax.random.split(key)

    batch, num_classes = 8, 2                   # binary classification head
    outputs = jax.random.normal(k_logits, (batch, num_classes), dtype=jnp.float32)
    labels = jax.random.randint(k_labels, (batch,), 0, num_classes, dtype=jnp.int32)

    def _ref(outs, labs, cost_matrix=COST_MATRIX):
        logp = jax.nn.log_softmax(outs.astype(jnp.float32), axis=-1)
        nll = -jnp.take_along_axis(logp, labs[:, None], axis=-1)[:, 0]
        cmat = jnp.asarray(cost_matrix, jnp.float32)
        w = cmat[labs, labs]
        return jnp.sum(w * nll) / jnp.sum(w), jnp.mean(nll)

    cs_loss, ce_loss = cost_sensitive_loss(outputs, labels)
    jax.block_until_ready((cs_loss, ce_loss))

    cs_ref, ce_ref = _ref(outputs, labels)
    assert np.allclose(np.asarray(ce_loss), np.asarray(ce_ref), rtol=1e-5, atol=1e-6)
    assert np.allclose(np.asarray(cs_loss), np.asarray(cs_ref),
                       rtol=1e-5, atol=1e-6, equal_nan=True)

    # Exercise the multi-block grid + tail-mask path (still small): 2000 samples,
    # 8-row tiles -> grid=(2,), 48 padded samples masked, non-degenerate costs.
    k2, k3 = jax.random.split(jax.random.PRNGKey(1))
    big_out = jax.random.normal(k2, (2000, 2), dtype=jnp.float32)
    big_lab = jax.random.randint(k3, (2000,), 0, 2, dtype=jnp.int32)
    cm2 = ((2.0, 3.0), (1.0, 4.0))
    cs2, ce2 = cost_sensitive_loss(big_out, big_lab, cost_matrix=cm2, max_tile_rows=8)
    jax.block_until_ready((cs2, ce2))
    cs2_ref, ce2_ref = _ref(big_out, big_lab, cm2)
    assert np.allclose(np.asarray(ce2), np.asarray(ce2_ref), rtol=1e-5, atol=1e-6)
    assert np.allclose(np.asarray(cs2), np.asarray(cs2_ref), rtol=1e-5, atol=1e-6)

    print("KERNEL_OK")
</pallas_src>

<mosaic_0001>
module attributes {stable_mosaic.version = 11 : i64} {
  func.func @_cs_partials_kernel(%arg0: i32, %arg1: memref<2x1x128xf32, #tpu.memory_space<vmem>>, %arg2: memref<1x128xi32, #tpu.memory_space<vmem>>, %arg3: memref<1x3x128xf32, #tpu.memory_space<vmem>>) attributes {dimension_semantics = [#tpu.dimension_semantics<parallel>], iteration_bounds = array<i64: 1>, scalar_prefetch = 0 : i64, scratch_operands = 0 : i64, tpu.core_type = #tpu.core_type<tc>, window_params = [{transform_indices = @transform_0, window_bounds = array<i64: 2, 1, 128>}, {transform_indices = @transform_1, window_bounds = array<i64: 1, 128>}, {transform_indices = @transform_2, window_bounds = array<i64: 1, 3, 128>}]} {
    %c0 = arith.constant 0 : index
    %c0_0 = arith.constant 0 : index
    %c0_1 = arith.constant 0 : index
    %0 = vector.load %arg1[%c0, %c0_0, %c0_1] : memref<2x1x128xf32, #tpu.memory_space<vmem>>, vector<1x1x128xf32>
    %1 = vector.shape_cast %0 : vector<1x1x128xf32> to vector<1x128xf32>
    %c1 = arith.constant 1 : index
    %c0_2 = arith.constant 0 : index
    %c0_3 = arith.constant 0 : index
    %2 = vector.load %arg1[%c1, %c0_2, %c0_3] : memref<2x1x128xf32, #tpu.memory_space<vmem>>, vector<1x1x128xf32>
    %3 = vector.shape_cast %2 : vector<1x1x128xf32> to vector<1x128xf32>
    %c0_4 = arith.constant 0 : index
    %c0_5 = arith.constant 0 : index
    %4 = vector.load %arg2[%c0_4, %c0_5] : memref<1x128xi32, #tpu.memory_space<vmem>>, vector<1x128xi32>
    %c1_i32 = arith.constant 1 : i32
    %5 = vector.broadcast %c1_i32 : i32 to vector<1x128xi32>
    %6 = arith.cmpi eq, %4, %5 : vector<1x128xi32>
    %7 = arith.subf %1, %3 : vector<1x128xf32>
    %8 = arith.subf %3, %1 : vector<1x128xf32>
    %9 = arith.select %6, %7, %8 : vector<1x128xi1>, vector<1x128xf32>
    %cst = arith.constant 0.000000e+00 : f32
    %10 = vector.broadcast %cst : f32 to vector<1x128xf32>
    %11 = arith.maximumf %9, %10 : vector<1x128xf32>
    %12 = math.absf %9 : vector<1x128xf32>
    %cst_6 = arith.constant 0.000000e+00 : f32
    %13 = vector.broadcast %cst_6 : f32 to vector<1x128xf32>
    %14 = arith.subf %13, %12 : vector<1x128xf32>
    %15 = math.exp %14 : vector<1x128xf32>
    %cst_7 = arith.constant 1.000000e+00 : f32
    %16 = vector.broadcast %cst_7 : f32 to vector<1x128xf32>
    %17 = arith.addf %16, %15 : vector<1x128xf32>
    %18 = math.log %17 : vector<1x128xf32>
    %19 = arith.addf %11, %18 : vector<1x128xf32>
    %cst_8 = arith.constant 0.000000e+00 : f32
    %cst_9 = arith.constant 0.000000e+00 : f32
    %20 = vector.broadcast %cst_8 : f32 to vector<1x128xf32>
    %21 = vector.broadcast %cst_9 : f32 to vector<1x128xf32>
    %22 = arith.select %6, %20, %21 : vector<1x128xi1>, vector<1x128xf32>
    %23 = tpu.iota {dimensions = array<i32: 0>} : vector<1x128xi32>
    %24 = tpu.iota {dimensions = array<i32: 1>} : vector<1x128xi32>
    %c1_i32_10 = arith.constant 1 : i32
    %25 = arith.muli %arg0, %c1_i32_10 : i32
    %26 = vector.broadcast %25 : i32 to vector<1x128xi32>
    %27 = arith.addi %26, %23 : vector<1x128xi32>
    %c128_i32 = arith.constant 128 : i32
    %28 = vector.broadcast %c128_i32 : i32 to vector<1x128xi32>
    %29 = arith.muli %27, %28 : vector<1x128xi32>
    %30 = arith.addi %29, %24 : vector<1x128xi32>
    %c8_i32 = arith.constant 8 : i32
    %31 = vector.broadcast %c8_i32 : i32 to vector<1x128xi32>
    %32 = arith.cmpi slt, %30, %31 : vector<1x128xi32>
    %33 = arith.extui %32 : vector<1x128xi1> to vector<1x128xi32>
    %34 = arith.sitofp %33 : vector<1x128xi32> to vector<1x128xf32>
    %35 = arith.mulf %19, %34 : vector<1x128xf32>
    %36 = vector.shape_cast %35 : vector<1x128xf32> to vector<1x1x128xf32>
    %cst_11 = arith.constant dense<0.000000e+00> : vector<1xf32>
    %37 = vector.multi_reduction <add>, %36, %cst_11 [1, 2] : vector<1x1x128xf32> to vector<1xf32>
    %38 = vector.shape_cast %37 : vector<1xf32> to vector<1x1x1xf32>
    %39 = vector.extract %38[0, 0, 0] : f32 from vector<1x1x1xf32>
    %40 = vector.broadcast %39 : f32 to vector<1x1xf32>
    %41 = arith.mulf %22, %35 : vector<1x128xf32>
    %42 = vector.shape_cast %41 : vector<1x128xf32> to vector<1x1x128xf32>
    %cst_12 = arith.constant dense<0.000000e+00> : vector<1xf32>
    %43 = vector.multi_reduction <add>, %42, %cst_12 [1, 2] : vector<1x1x128xf32> to vector<1xf32>
    %44 = vector.shape_cast %43 : vector<1xf32> to vector<1x1x1xf32>
    %45 = vector.extract %44[0, 0, 0] : f32 from vector<1x1x1xf32>
    %46 = vector.broadcast %45 : f32 to vector<1x1xf32>
    %47 = arith.mulf %22, %34 : vector<1x128xf32>
    %48 = vector.shape_cast %47 : vector<1x128xf32> to vector<1x1x128xf32>
    %cst_13 = arith.constant dense<0.000000e+00> : vector<1xf32>
    %49 = vector.multi_reduction <add>, %48, %cst_13 [1, 2] : vector<1x1x128xf32> to vector<1xf32>
    %50 = vector.shape_cast %49 : vector<1xf32> to vector<1x1x1xf32>
    %51 = vector.extract %50[0, 0, 0] : f32 from vector<1x1x1xf32>
    %52 = vector.broadcast %51 : f32 to vector<1x1xf32>
    %53 = vector.shape_cast %40 : vector<1x1xf32> to vector<1x1xf32>
    %54 = vector.broadcast %53 : vector<1x1xf32> to vector<1x128xf32>
    %55 = vector.shape_cast %46 : vector<1x1xf32> to vector<1x1xf32>
    %56 = vector.broadcast %55 : vector<1x1xf32> to vector<1x128xf32>
    %57 = vector.shape_cast %52 : vector<1x1xf32> to vector<1x1xf32>
    %58 = vector.broadcast %57 : vector<1x1xf32> to vector<1x128xf32>
    %59 = tpu.concatenate %54, %56, %58 in 0 : vector<1x128xf32>, vector<1x128xf32>, vector<1x128xf32> -> vector<3x128xf32>
    %c0_14 = arith.constant 0 : index
    %c0_15 = arith.constant 0 : index
    %c0_16 = arith.constant 0 : index
    %60 = vector.load %arg3[%c0_14, %c0_15, %c0_16] : memref<1x3x128xf32, #tpu.memory_space<vmem>>, vector<1x3x128xf32>
    %61 = vector.shape_cast %60 : vector<1x3x128xf32> to vector<3x128xf32>
    %62 = vector.shape_cast %59 : vector<3x128xf32> to vector<1x3x128xf32>
    tpu.vector_store %arg3[%c0_14, %c0_15, %c0_16], %62 {strides = array<i32>} : memref<1x3x128xf32, #tpu.memory_space<vmem>>, vector<1x3x128xf32>,
    return
  }
  func.func @transform_0(%arg0: i32) -> (i32, i32, i32) {
    %c0_i32 = arith.constant 0 : i32
    %c0_i32_0 = arith.constant 0 : i32
    %c0_i32_1 = arith.constant 0 : i32
    return %c0_i32, %arg0, %c0_i32_0 : i32, i32, i32
  }
  func.func @transform_1(%arg0: i32) -> (i32, i32) {
    %c0_i32 = arith.constant 0 : i32
    %c0_i32_0 = arith.constant 0 : i32
    return %arg0, %c0_i32 : i32, i32
  }
  func.func @transform_2(%arg0: i32) -> (i32, i32, i32) {
    %c0_i32 = arith.constant 0 : i32
    %c0_i32_0 = arith.constant 0 : i32
    %c0_i32_1 = arith.constant 0 : i32
    return %arg0, %c0_i32, %c0_i32_0 : i32, i32, i32
  }
}

</mosaic_0001>

<llo_original>
// kernel: tpu_custom_call.1
$region0: #{tpu_custom_call.1}
  #allocation0 [shape = 'u32[]', space=smem, size = 0x4, offset = 0x4, fixed_abs, tag = 'smem constant byte address 0x4 - core index']
  #allocation1 [shape = 'u32[144,128]{1,0:T(1,128)}', space=vmem, size = 0x12000, scoped, tag = 'internal scratch']
  %s0 = inlined_call_operand.hbm [shape: f32[2,1,128], index: 0, kind: input, shape index: {}]
  %s1 = inlined_call_operand.vmem [shape: s32[1,128], index: 1, kind: input, shape index: {}]
  %s2 = inlined_call_operand.vmem [shape: f32[1,3,128], index: 2, kind: output, shape index: {}]
  %s3 = sld [smem:[#allocation0]]
  $region22: #{tpu_custom_call.1} parent=0
    _
  %s5 = ssub.s32 1, %s3
  %s6 = scalar_select 0, %s5, %s3
  $region1: #{tpu_custom_call.1} parent=0
    #allocation2 [shape = 'u8[1024]{0}', space=vmem, size = 0x400, scoped, tag = 'input window, operand 0, single buffered']
    #allocation3 [shape = 's32[1]{0}', space=sflag, size = 0x4, scoped, tag = 'scoped memory for tpu_custom_call.1']
    %7 = vsyncpa [#allocation3], 0
    // Predicated region
    $region2: #{tpu_custom_call.1} parent=1 // pred_check
      _
    $region3: #{tpu_custom_call.1} parent=1 // pred_check_branch
      %9 = sbr.rel (0) target = $region5
    $region4: #{tpu_custom_call.1} parent=1 // pred_region
      %s11 = ssub.s32 32, 32
      %12 = vsyncadd [#allocation3], %s11
      %s13 = sshll.u32 [#allocation2], 4
      %s14 = int_to_ptr.vmem [resolvable:$true] %s13
      %19 = dma.hbm_to_vmem [thread:$0]  %s0, 32, %s14, [#allocation3], 16, 16, 1
    $region5: #{tpu_custom_call.1} parent=1 // pred_fallthru
      _
    // Predicated region
    $region6: #{tpu_custom_call.1} parent=1 // pred_check
      _
    $region7: #{tpu_custom_call.1} parent=1 // pred_check_branch
      %21 = sbr.rel (0) target = $region9
    $region8: #{tpu_custom_call.1} parent=1 // pred_region
      _
    $region9: #{tpu_custom_call.1} parent=1 // pred_fallthru
      _
    // Predicated region
    $region10: #{tpu_custom_call.1} parent=1 // pred_check
      _
    $region11: #{tpu_custom_call.1} parent=1 // pred_check_branch
      %23 = sbr.rel (0) target = $region13
    $region12: #{tpu_custom_call.1} parent=1 // pred_region
      %24 = dma.done [#allocation3], 32
    $region13: #{tpu_custom_call.1} parent=1 // pred_fallthru
      _
    %v25 = vld [vmem:[#allocation2] sm:$0x1]
    %s26 = scalar_lea.vmem [#allocation2], 1
    %v27 = vld [vmem:[%s26] sm:$0x1]
    %v28 = vld [vmem:[%s1] sm:$0x1]
    %vm29 = vcmp.eq.s32.totalorder %v28, 1
    %v30 = vsub.f32 %v25, %v27
    %v31 = vsub.f32 %v27, %v25
    %v32 = vsel %vm29, %v30, %v31
    %v33 = vmax.f32 %v32, 0.0
    %v34 = vand.u32 2147483647, %v32
    %v35 = vsub.f32 0.0, %v34
    %v36 = vmul.f32 %v35, 1.442695
    %v37 = vpow.pop %v36
    %v38 = vadd.f32 %v37, 1.0
    %v39 = vlog2.pop %v38
    %v40 = vmul.f32 %v39, 0.6931472
    %v41 = vadd.f32 %v33, %v40
    %v42 = vlaneseq
    %v43 = vshrl.u32 %v42, 7
    %v44 = vlaneseq
    %v45 = vand.u32 %v44, 127
    %v46 = vstv 0
    %v47 = vadd.s32 %v46, %v43
    %v48 = vmul.u32 %v47, 128
    %v49 = vadd.s32 %v48, %v45
    %vm50 = vcmp.lt.s32.totalorder %v49, 8
    %v51 = vsel %vm50, 1, 0
    %v52 = vcvt.s32.f32 %v51
    %v53 = vmul.f32 %v41, %v52
    %vm54 = vcmask 1040384
    %v55 = vsel %vm54, %v53, 0.0
    %56 = vadd.xlane.f32.xlu0 %v55
    %v57 = vpop.xlane.xlu0 %56
    %v58 = vrot.slane %v57, 4
    %v59 = vadd.f32 %v57, %v58
    %v60 = vrot.slane %v59, 2
    %v61 = vadd.f32 %v59, %v60
    %v62 = vrot.slane %v61, 1
    %v63 = vadd.f32 %v61, %v62
    %s64 = vtos %v63
    %v65 = vmul.f32 %v53, 0.0
    %v66 = vsel %vm54, %v65, 0.0
    %67 = vadd.xlane.f32.xlu0 %v66
    %v68 = vpop.xlane.xlu0 %67
    %v69 = vrot.slane %v68, 4
    %v70 = vadd.f32 %v68, %v69
    %v71 = vrot.slane %v70, 2
    %v72 = vadd.f32 %v70, %v71
    %v73 = vrot.slane %v72, 1
    %v74 = vadd.f32 %v72, %v73
    %s75 = vtos %v74
    %v76 = vmul.f32 %v52, 0.0
    %v77 = vsel %vm54, %v76, 0.0
    %78 = vadd.xlane.f32.xlu0 %v77
    %v79 = vpop.xlane.xlu0 %78
    %v80 = vrot.slane %v79, 4
    %v81 = vadd.f32 %v79, %v80
    %v82 = vrot.slane %v81, 2
    %v83 = vadd.f32 %v81, %v82
    %v84 = vrot.slane %v83, 1
    %v85 = vadd.f32 %v83, %v84
    %s86 = vtos %v85
    %v87 = vstv %s64
    %v88 = vstv %s75
    %v89 = vstv %s86
    %v90 = vsel %vm54, %v87, %v88
    %vm91 = vcmask 1041408
    %v92 = vsel %vm91, %v90, %v89
    %93 = vst [vmem:[%s2] sm:$0x7] %v92
    // Predicated region
    $region14: #{tpu_custom_call.1} parent=1 // pred_check
      _
    $region15: #{tpu_custom_call.1} parent=1 // pred_check_branch
      %95 = sbr.rel (0) target = $region17
    $region16: #{tpu_custom_call.1} parent=1 // pred_region
      _
    $region17: #{tpu_custom_call.1} parent=1 // pred_fallthru
      _
    // Predicated region
    $region18: #{tpu_custom_call.1} parent=1 // pred_check
      _
    $region19: #{tpu_custom_call.1} parent=1 // pred_check_branch
      %97 = sbr.rel (0) target = $region21
    $region20: #{tpu_custom_call.1} parent=1 // pred_region
      _
    $region21: #{tpu_custom_call.1} parent=1 // pred_fallthru
      _
    %98 = vsyncpa [#allocation3], 1

</llo_original>
